<compile_context>
chip_gen: v5e
topology: v5e:2x2
jax: 0.10.0
libtpu: 0.0.40
codegen_flags: <defaults>
</compile_context>

<pallas_src>
import jax
import jax.numpy as jnp
from jax.experimental import pallas as pl
from jax.experimental.pallas import tpu as pltpu

_LANE = 128
_SUBLANE = 8


def _round_up(x, m):
    return (x + m - 1) // m * m


def _vmem_capacity_bytes():
    """Per-core VMEM capacity; conservative fallback if the query is unavailable."""
    try:
        return int(pltpu.get_tpu_info().vmem_capacity_bytes)
    except Exception:
        return 64 << 20  # v7x per-TC size: safe lower bound everywhere


def _mlp_kernel(ccl_ref, drug_ref,
                w1a_ref, w1b_ref, b1_ref,
                w2_ref, b2_ref,
                w3_ref, b3_ref,
                w4_ref, b4_ref,
                w5t_ref, b5t_ref,
                o_ref):
    """Whole MLP hot path in VMEM: 6 MXU matmuls (layer 1 split) + VPU bias/ReLU.

    The final layer is emitted transposed: only row 0 of w5t/b5t is live, so
    o_ref (8, tile_b) carries the per-sample outputs along the lane axis in row 0.
    """
    f32 = jnp.float32

    # Layer 1: split matmul replaces concat((ccl, drug), 1) @ W1.
    h = (jnp.dot(ccl_ref[...].astype(jnp.bfloat16), w1a_ref[...],
                 preferred_element_type=f32)
         + jnp.dot(drug_ref[...].astype(jnp.bfloat16), w1b_ref[...],
                   preferred_element_type=f32)
         + b1_ref[...])
    h = jnp.maximum(h, 0.0)

    def layer(h, w_ref, b_ref):
        h = jnp.dot(h.astype(jnp.bfloat16), w_ref[...],
                    preferred_element_type=f32) + b_ref[...]
        return jnp.maximum(h, 0.0)

    h = layer(h, w2_ref, b2_ref)
    h = layer(h, w3_ref, b3_ref)
    h = layer(h, w4_ref, b4_ref)

    # Final layer, transposed: (8, n4) . (tile_b, n4)^T -> (8, tile_b).
    out_t = jax.lax.dot_general(
        w5t_ref[...], h.astype(jnp.bfloat16),
        dimension_numbers=(((1,), (1,)), ((), ())),
        preferred_element_type=f32) + b5t_ref[...]

    o_ref[...] = out_t.astype(o_ref.dtype)


@jax.jit
def model3_forward(train_ccl, train_drug, params):
    """params: list of 5 (W, b); W shaped (in, out) in bf16, b shaped (1, out) in f32."""
    B, ccl_size = train_ccl.shape
    drug_size = train_drug.shape[1]
    d = ccl_size + drug_size

    (w1, b1), (w2, b2), (w3, b3), (w4, b4), (w5, b5) = params

    # Split layer-1 weight so no concatenated [B, d] activation ever hits HBM.
    w1a = w1[:ccl_size]
    w1b = w1[ccl_size:]

    # Transposed final layer: pack W5 (n4, 1) into row 0 of an (8, n4) matrix so the
    # per-tile output is a lane-dense (8, tile_b) block instead of 128 padded lanes/row.
    n4 = w5.shape[0]
    w5t = jnp.zeros((_SUBLANE, n4), w5.dtype).at[0, :].set(w5[:, 0])
    b5t = jnp.zeros((_SUBLANE, 1), jnp.float32).at[0, 0].set(b5[0, 0])

    # ----- generation-aware tiling / VMEM budget -----------------------------------
    vmem_cap = _vmem_capacity_bytes()
    vmem_budget = vmem_cap - (8 << 20)            # headroom for compiler-internal scratch
    tile_cap = 512 if vmem_cap <= (64 << 20) else 1024   # v7x (64 MiB/TC) vs v5e/v6e

    Bq = max(int(B), 1)
    # Multiple of 16 (bf16 sublane); cap at ceil(B/2) so >=2 grid steps where possible
    # (lets the "parallel" batch axis shard across v7x's two TensorCores).
    tile_b = min(tile_cap, max(16, _round_up(pl.cdiv(Bq, 2), 16)))
    B_pad = _round_up(Bq, tile_b)
    if B_pad != B:
        train_ccl = jnp.pad(train_ccl, ((0, B_pad - B), (0, 0)))
        train_drug = jnp.pad(train_drug, ((0, B_pad - B), (0, 0)))
    num_tiles = B_pad // tile_b
    grid = (num_tiles,)

    weight_ops = [w1a, w1b, b1, w2, b2, w3, b3, w4, b4, w5t, b5t]

    # Grid-invariant operands: VMEM-resident, single-buffered (no prefetch buffer,
    # no per-step DMA descriptors).
    weight_specs = [
        pl.BlockSpec(w.shape, lambda i: (0, 0), pipeline_mode=pl.Buffered(1))
        for w in weight_ops
    ]

    # Streamed activations keep the default double-buffering.
    # (Buffered(3) on these two specs is a cheap sweep candidate if DMA latency shows.)
    in_specs = (
        [pl.BlockSpec((tile_b, ccl_size), lambda i: (i, 0)),
         pl.BlockSpec((tile_b, drug_size), lambda i: (i, 0))]
        + weight_specs
    )
    out_specs = pl.BlockSpec((_SUBLANE, tile_b), lambda i: (i, 0))

    # VMEM accounting with the actual buffer counts.
    resident = sum(int(a.size) * a.dtype.itemsize for a in weight_ops)   # 1x (Buffered(1))
    streamed_in = 2 * tile_b * (ccl_size + drug_size) * 4                # 2x double-buffered
    streamed_out = 2 * _SUBLANE * tile_b * 4                             # 2x double-buffered
    act_scratch = 4 * tile_b * d * 4                                     # f32 + bf16 intermediates
    need = resident + streamed_in + streamed_out + act_scratch

    if resident > vmem_budget:
        # TODO(synk): add a K-tiled / per-layer streamed-weight fallback for very large d.
        raise ValueError(
            f"Model3 resident weights ({resident / 2**20:.1f} MiB) exceed the VMEM "
            f"budget ({vmem_budget / 2**20:.1f} MiB) for d={d}; the fully-resident "
            "kernel does not support this feature size.")

    vmem_limit = min(vmem_budget, max(16 << 20, int(1.25 * need)))

    out = pl.pallas_call(
        _mlp_kernel,
        out_shape=jax.ShapeDtypeStruct((num_tiles * _SUBLANE, tile_b), jnp.float32),
        grid=grid,
        in_specs=in_specs,
        out_specs=out_specs,
        compiler_params=pltpu.CompilerParams(
            dimension_semantics=("parallel",),   # megacore sharding on v7x; harmless elsewhere
            vmem_limit_bytes=vmem_limit,
        ),
    )(train_ccl, train_drug, *weight_ops)

    # Row 0 of each (8, tile_b) block holds that tile's batch outputs in lane order.
    out = out.reshape(num_tiles, _SUBLANE, tile_b)[:, 0, :].reshape(B_pad)[:B]
    return out[:, None]


def init_params(key, cll_input_layer_size, drug_input_layer_size):
    """Deterministic init matching nn.Linear default (uniform +/- 1/sqrt(fan_in)).

    Weights are stored (in, out) in bf16 (halves HBM/VMEM weight traffic);
    biases stay f32.
    """
    d = cll_input_layer_size + drug_input_layer_size
    assert int(d * 0.0625) >= 1, (
        "cll+drug feature size must be >= 16, otherwise the last hidden layer "
        "collapses to 0 features (matches the int() truncation in the PyTorch spec).")
    sizes = [d, int(d * 0.5), int(d * 0.25), int(d * 0.125), int(d * 0.0625), 1]
    params = []
    for i in range(5):
        fan_in, fan_out = sizes[i], sizes[i + 1]
        key, kw, kb = jax.random.split(key, 3)
        bound = 1.0 / float(fan_in) ** 0.5
        w = jax.random.uniform(kw, (fan_in, fan_out), jnp.float32, -bound, bound)
        b = jax.random.uniform(kb, (1, fan_out), jnp.float32, -bound, bound)
        params.append((w.astype(jnp.bfloat16), b))
    return params


def reference_forward(train_ccl, train_drug, params):
    """Pure-JAX (f32) reference using the same (bf16-rounded) weights."""
    h = jnp.concatenate((train_ccl, train_drug), axis=1)
    for i, (w, b) in enumerate(params):
        h = h @ w.astype(jnp.float32) + b
        if i < len(params) - 1:
            h = jnp.maximum(h, 0.0)
    return h


if __name__ == "__main__":
    key = jax.random.PRNGKey(0)

    batch = 8
    cll_size = 32
    drug_size = 32

    key, k1, k2, kp = jax.random.split(key, 4)
    train_ccl = jax.random.normal(k1, (batch, cll_size), jnp.float32)
    train_drug = jax.random.normal(k2, (batch, drug_size), jnp.float32)

    params = init_params(kp, cll_size, drug_size)

    out = model3_forward(train_ccl, train_drug, params)
    out = jax.block_until_ready(out)

    ref = reference_forward(train_ccl, train_drug, params)
    assert out.shape == (batch, 1), out.shape
    # bf16 matmuls with f32 accumulation: loosen tolerance vs the f32 reference.
    assert jnp.allclose(out, ref, atol=2e-2, rtol=2e-2), (out, ref)

    print("KERNEL_OK")
</pallas_src>

<mosaic_0001>
module attributes {stable_mosaic.version = 11 : i64} {
  func.func @_mlp_kernel(%arg0: i32, %arg1: memref<16x32xf32, #tpu.memory_space<vmem>>, %arg2: memref<16x32xf32, #tpu.memory_space<vmem>>, %arg3: memref<32x32xbf16, #tpu.memory_space<vmem>>, %arg4: memref<32x32xbf16, #tpu.memory_space<vmem>>, %arg5: memref<1x32xf32, #tpu.memory_space<vmem>>, %arg6: memref<32x16xbf16, #tpu.memory_space<vmem>>, %arg7: memref<1x16xf32, #tpu.memory_space<vmem>>, %arg8: memref<16x8xbf16, #tpu.memory_space<vmem>>, %arg9: memref<1x8xf32, #tpu.memory_space<vmem>>, %arg10: memref<8x4xbf16, #tpu.memory_space<vmem>>, %arg11: memref<1x4xf32, #tpu.memory_space<vmem>>, %arg12: memref<8x4xbf16, #tpu.memory_space<vmem>>, %arg13: memref<8x1xf32, #tpu.memory_space<vmem>>, %arg14: memref<8x16xf32, #tpu.memory_space<vmem>>) attributes {dimension_semantics = [#tpu.dimension_semantics<parallel>], iteration_bounds = array<i64: 1>, scalar_prefetch = 0 : i64, scratch_operands = 0 : i64, tpu.core_type = #tpu.core_type<tc>, window_params = [{transform_indices = @transform_0, window_bounds = array<i64: 16, 32>}, {transform_indices = @transform_1, window_bounds = array<i64: 16, 32>}, {pipeline_mode = #tpu.pipeline_mode<synchronous>, transform_indices = @transform_2, window_bounds = array<i64: 32, 32>}, {pipeline_mode = #tpu.pipeline_mode<synchronous>, transform_indices = @transform_3, window_bounds = array<i64: 32, 32>}, {pipeline_mode = #tpu.pipeline_mode<synchronous>, transform_indices = @transform_4, window_bounds = array<i64: 1, 32>}, {pipeline_mode = #tpu.pipeline_mode<synchronous>, transform_indices = @transform_5, window_bounds = array<i64: 32, 16>}, {pipeline_mode = #tpu.pipeline_mode<synchronous>, transform_indices = @transform_6, window_bounds = array<i64: 1, 16>}, {pipeline_mode = #tpu.pipeline_mode<synchronous>, transform_indices = @transform_7, window_bounds = array<i64: 16, 8>}, {pipeline_mode = #tpu.pipeline_mode<synchronous>, transform_indices = @transform_8, window_bounds = array<i64: 1, 8>}, {pipeline_mode = #tpu.pipeline_mode<synchronous>, transform_indices = @transform_9, window_bounds = array<i64: 8, 4>}, {pipeline_mode = #tpu.pipeline_mode<synchronous>, transform_indices = @transform_10, window_bounds = array<i64: 1, 4>}, {pipeline_mode = #tpu.pipeline_mode<synchronous>, transform_indices = @transform_11, window_bounds = array<i64: 8, 4>}, {pipeline_mode = #tpu.pipeline_mode<synchronous>, transform_indices = @transform_12, window_bounds = array<i64: 8, 1>}, {transform_indices = @transform_13, window_bounds = array<i64: 8, 16>}]} {
    %c0 = arith.constant 0 : index
    %c0_0 = arith.constant 0 : index
    %0 = vector.load %arg1[%c0, %c0_0] : memref<16x32xf32, #tpu.memory_space<vmem>>, vector<16x32xf32>
    %1 = arith.truncf %0 : vector<16x32xf32> to vector<16x32xbf16>
    %c0_1 = arith.constant 0 : index
    %c0_2 = arith.constant 0 : index
    %2 = vector.load %arg3[%c0_1, %c0_2] : memref<32x32xbf16, #tpu.memory_space<vmem>>, vector<32x32xbf16>
    %cst = arith.constant dense<0.000000e+00> : vector<16x32xf32>
    %3 = tpu.matmul %1, %2, %cst {dimension_numbers = #tpu.dot_dimension_numbers<[1], [0], [0], [1], [0, 0, 1, 1], [], []>} : vector<16x32xbf16>, vector<32x32xbf16>, vector<16x32xf32> -> vector<16x32xf32>
    %c0_3 = arith.constant 0 : index
    %c0_4 = arith.constant 0 : index
    %4 = vector.load %arg2[%c0_3, %c0_4] : memref<16x32xf32, #tpu.memory_space<vmem>>, vector<16x32xf32>
    %5 = arith.truncf %4 : vector<16x32xf32> to vector<16x32xbf16>
    %c0_5 = arith.constant 0 : index
    %c0_6 = arith.constant 0 : index
    %6 = vector.load %arg4[%c0_5, %c0_6] : memref<32x32xbf16, #tpu.memory_space<vmem>>, vector<32x32xbf16>
    %cst_7 = arith.constant dense<0.000000e+00> : vector<16x32xf32>
    %7 = tpu.matmul %5, %6, %cst_7 {dimension_numbers = #tpu.dot_dimension_numbers<[1], [0], [0], [1], [0, 0, 1, 1], [], []>} : vector<16x32xbf16>, vector<32x32xbf16>, vector<16x32xf32> -> vector<16x32xf32>
    %8 = arith.addf %3, %7 : vector<16x32xf32>
    %c0_8 = arith.constant 0 : index
    %c0_9 = arith.constant 0 : index
    %9 = vector.load %arg5[%c0_8, %c0_9] : memref<1x32xf32, #tpu.memory_space<vmem>>, vector<1x32xf32>
    %10 = vector.broadcast %9 : vector<1x32xf32> to vector<16x32xf32>
    %11 = arith.addf %8, %10 : vector<16x32xf32>
    %cst_10 = arith.constant 0.000000e+00 : f32
    %12 = vector.broadcast %cst_10 : f32 to vector<16x32xf32>
    %13 = arith.maximumf %11, %12 : vector<16x32xf32>
    %14 = arith.truncf %13 : vector<16x32xf32> to vector<16x32xbf16>
    %c0_11 = arith.constant 0 : index
    %c0_12 = arith.constant 0 : index
    %15 = vector.load %arg6[%c0_11, %c0_12] : memref<32x16xbf16, #tpu.memory_space<vmem>>, vector<32x16xbf16>
    %cst_13 = arith.constant dense<0.000000e+00> : vector<16x16xf32>
    %16 = tpu.matmul %14, %15, %cst_13 {dimension_numbers = #tpu.dot_dimension_numbers<[1], [0], [0], [1], [0, 0, 1, 1], [], []>} : vector<16x32xbf16>, vector<32x16xbf16>, vector<16x16xf32> -> vector<16x16xf32>
    %c0_14 = arith.constant 0 : index
    %c0_15 = arith.constant 0 : index
    %17 = vector.load %arg7[%c0_14, %c0_15] : memref<1x16xf32, #tpu.memory_space<vmem>>, vector<1x16xf32>
    %18 = vector.broadcast %17 : vector<1x16xf32> to vector<16x16xf32>
    %19 = arith.addf %16, %18 : vector<16x16xf32>
    %cst_16 = arith.constant 0.000000e+00 : f32
    %20 = vector.broadcast %cst_16 : f32 to vector<16x16xf32>
    %21 = arith.maximumf %19, %20 : vector<16x16xf32>
    %22 = arith.truncf %21 : vector<16x16xf32> to vector<16x16xbf16>
    %c0_17 = arith.constant 0 : index
    %c0_18 = arith.constant 0 : index
    %23 = vector.load %arg8[%c0_17, %c0_18] : memref<16x8xbf16, #tpu.memory_space<vmem>>, vector<16x8xbf16>
    %cst_19 = arith.constant dense<0.000000e+00> : vector<16x8xf32>
    %24 = tpu.matmul %22, %23, %cst_19 {dimension_numbers = #tpu.dot_dimension_numbers<[1], [0], [0], [1], [0, 0, 1, 1], [], []>} : vector<16x16xbf16>, vector<16x8xbf16>, vector<16x8xf32> -> vector<16x8xf32>
    %c0_20 = arith.constant 0 : index
    %c0_21 = arith.constant 0 : index
    %25 = vector.load %arg9[%c0_20, %c0_21] : memref<1x8xf32, #tpu.memory_space<vmem>>, vector<1x8xf32>
    %26 = vector.broadcast %25 : vector<1x8xf32> to vector<16x8xf32>
    %27 = arith.addf %24, %26 : vector<16x8xf32>
    %cst_22 = arith.constant 0.000000e+00 : f32
    %28 = vector.broadcast %cst_22 : f32 to vector<16x8xf32>
    %29 = arith.maximumf %27, %28 : vector<16x8xf32>
    %30 = arith.truncf %29 : vector<16x8xf32> to vector<16x8xbf16>
    %c0_23 = arith.constant 0 : index
    %c0_24 = arith.constant 0 : index
    %31 = vector.load %arg10[%c0_23, %c0_24] : memref<8x4xbf16, #tpu.memory_space<vmem>>, vector<8x4xbf16>
    %cst_25 = arith.constant dense<0.000000e+00> : vector<16x4xf32>
    %32 = tpu.matmul %30, %31, %cst_25 {dimension_numbers = #tpu.dot_dimension_numbers<[1], [0], [0], [1], [0, 0, 1, 1], [], []>} : vector<16x8xbf16>, vector<8x4xbf16>, vector<16x4xf32> -> vector<16x4xf32>
    %c0_26 = arith.constant 0 : index
    %c0_27 = arith.constant 0 : index
    %33 = vector.load %arg11[%c0_26, %c0_27] : memref<1x4xf32, #tpu.memory_space<vmem>>, vector<1x4xf32>
    %34 = vector.broadcast %33 : vector<1x4xf32> to vector<16x4xf32>
    %35 = arith.addf %32, %34 : vector<16x4xf32>
    %cst_28 = arith.constant 0.000000e+00 : f32
    %36 = vector.broadcast %cst_28 : f32 to vector<16x4xf32>
    %37 = arith.maximumf %35, %36 : vector<16x4xf32>
    %c0_29 = arith.constant 0 : index
    %c0_30 = arith.constant 0 : index
    %38 = vector.load %arg12[%c0_29, %c0_30] : memref<8x4xbf16, #tpu.memory_space<vmem>>, vector<8x4xbf16>
    %39 = arith.truncf %37 : vector<16x4xf32> to vector<16x4xbf16>
    %cst_31 = arith.constant dense<0.000000e+00> : vector<8x16xf32>
    %40 = tpu.matmul %38, %39, %cst_31 {dimension_numbers = #tpu.dot_dimension_numbers<[1], [1], [0], [0], [0, 0, 1, 0], [], []>} : vector<8x4xbf16>, vector<16x4xbf16>, vector<8x16xf32> -> vector<8x16xf32>
    %c0_32 = arith.constant 0 : index
    %c0_33 = arith.constant 0 : index
    %41 = vector.load %arg13[%c0_32, %c0_33] : memref<8x1xf32, #tpu.memory_space<vmem>>, vector<8x1xf32>
    %42 = vector.broadcast %41 : vector<8x1xf32> to vector<8x16xf32>
    %43 = arith.addf %40, %42 : vector<8x16xf32>
    %c0_34 = arith.constant 0 : index
    %c0_35 = arith.constant 0 : index
    %44 = vector.load %arg14[%c0_34, %c0_35] : memref<8x16xf32, #tpu.memory_space<vmem>>, vector<8x16xf32>
    tpu.vector_store %arg14[%c0_34, %c0_35], %43 {strides = array<i32>} : memref<8x16xf32, #tpu.memory_space<vmem>>, vector<8x16xf32>,
    return
  }
  func.func @transform_0(%arg0: i32) -> (i32, i32) {
    %c0_i32 = arith.constant 0 : i32
    %c0_i32_0 = arith.constant 0 : i32
    return %arg0, %c0_i32 : i32, i32
  }
  func.func @transform_1(%arg0: i32) -> (i32, i32) {
    %c0_i32 = arith.constant 0 : i32
    %c0_i32_0 = arith.constant 0 : i32
    return %arg0, %c0_i32 : i32, i32
  }
  func.func @transform_2(%arg0: i32) -> (i32, i32) {
    %c0_i32 = arith.constant 0 : i32
    %c0_i32_0 = arith.constant 0 : i32
    %c0_i32_1 = arith.constant 0 : i32
    return %c0_i32, %c0_i32_0 : i32, i32
  }
  func.func @transform_3(%arg0: i32) -> (i32, i32) {
    %c0_i32 = arith.constant 0 : i32
    %c0_i32_0 = arith.constant 0 : i32
    %c0_i32_1 = arith.constant 0 : i32
    return %c0_i32, %c0_i32_0 : i32, i32
  }
  func.func @transform_4(%arg0: i32) -> (i32, i32) {
    %c0_i32 = arith.constant 0 : i32
    %c0_i32_0 = arith.constant 0 : i32
    %c0_i32_1 = arith.constant 0 : i32
    return %c0_i32, %c0_i32_0 : i32, i32
  }
  func.func @transform_5(%arg0: i32) -> (i32, i32) {
    %c0_i32 = arith.constant 0 : i32
    %c0_i32_0 = arith.constant 0 : i32
    %c0_i32_1 = arith.constant 0 : i32
    return %c0_i32, %c0_i32_0 : i32, i32
  }
  func.func @transform_6(%arg0: i32) -> (i32, i32) {
    %c0_i32 = arith.constant 0 : i32
    %c0_i32_0 = arith.constant 0 : i32
    %c0_i32_1 = arith.constant 0 : i32
    return %c0_i32, %c0_i32_0 : i32, i32
  }
  func.func @transform_7(%arg0: i32) -> (i32, i32) {
    %c0_i32 = arith.constant 0 : i32
    %c0_i32_0 = arith.constant 0 : i32
    %c0_i32_1 = arith.constant 0 : i32
    return %c0_i32, %c0_i32_0 : i32, i32
  }
  func.func @transform_8(%arg0: i32) -> (i32, i32) {
    %c0_i32 = arith.constant 0 : i32
    %c0_i32_0 = arith.constant 0 : i32
    %c0_i32_1 = arith.constant 0 : i32
    return %c0_i32, %c0_i32_0 : i32, i32
  }
  func.func @transform_9(%arg0: i32) -> (i32, i32) {
    %c0_i32 = arith.constant 0 : i32
    %c0_i32_0 = arith.constant 0 : i32
    %c0_i32_1 = arith.constant 0 : i32
    return %c0_i32, %c0_i32_0 : i32, i32
  }
  func.func @transform_10(%arg0: i32) -> (i32, i32) {
    %c0_i32 = arith.constant 0 : i32
    %c0_i32_0 = arith.constant 0 : i32
    %c0_i32_1 = arith.constant 0 : i32
    return %c0_i32, %c0_i32_0 : i32, i32
  }
  func.func @transform_11(%arg0: i32) -> (i32, i32) {
    %c0_i32 = arith.constant 0 : i32
    %c0_i32_0 = arith.constant 0 : i32
    %c0_i32_1 = arith.constant 0 : i32
    return %c0_i32, %c0_i32_0 : i32, i32
  }
  func.func @transform_12(%arg0: i32) -> (i32, i32) {
    %c0_i32 = arith.constant 0 : i32
    %c0_i32_0 = arith.constant 0 : i32
    %c0_i32_1 = arith.constant 0 : i32
    return %c0_i32, %c0_i32_0 : i32, i32
  }
  func.func @transform_13(%arg0: i32) -> (i32, i32) {
    %c0_i32 = arith.constant 0 : i32
    %c0_i32_0 = arith.constant 0 : i32
    return %arg0, %c0_i32 : i32, i32
  }
}

</mosaic_0001>

<llo_original>
// kernel: model3_forward.1
$region0: #{model3_forward.1}
  #allocation0 [shape = 'u32[]', space=smem, size = 0x4, offset = 0x4, fixed_abs, tag = 'smem constant byte address 0x4 - core index']
  #allocation1 [shape = 'u32[72,128]{1,0:T(1,128)}', space=vmem, size = 0x9000, scoped, tag = 'internal scratch']
  %s0 = inlined_call_operand.vmem [shape: f32[16,32], index: 0, kind: input, shape index: {}]
  %s1 = inlined_call_operand.vmem [shape: f32[16,32], index: 1, kind: input, shape index: {}]
  %s2 = inlined_call_operand.vmem [shape: bf16[32,32], index: 2, kind: input, shape index: {}]
  %s3 = inlined_call_operand.vmem [shape: bf16[32,32], index: 3, kind: input, shape index: {}]
  %s4 = inlined_call_operand.vmem [shape: f32[1,32], index: 4, kind: input, shape index: {}]
  %s5 = inlined_call_operand.vmem [shape: bf16[32,16], index: 5, kind: input, shape index: {}]
  %s6 = inlined_call_operand.vmem [shape: f32[1,16], index: 6, kind: input, shape index: {}]
  %s7 = inlined_call_operand.vmem [shape: bf16[16,8], index: 7, kind: input, shape index: {}]
  %s8 = inlined_call_operand.vmem [shape: f32[1,8], index: 8, kind: input, shape index: {}]
  %s9 = inlined_call_operand.vmem [shape: bf16[8,4], index: 9, kind: input, shape index: {}]
  %s10 = inlined_call_operand.vmem [shape: f32[1,4], index: 10, kind: input, shape index: {}]
  %s11 = inlined_call_operand.vmem [shape: bf16[8,4], index: 11, kind: input, shape index: {}]
  %s12 = inlined_call_operand.vmem [shape: f32[8,1], index: 12, kind: input, shape index: {}]
  %s13 = inlined_call_operand.vmem [shape: f32[8,16], index: 13, kind: output, shape index: {}]
  %s14 = sld [smem:[#allocation0]]
  $region62: #{model3_forward.1} parent=0
    _
  %s16 = ssub.s32 1, %s14
  %s17 = scalar_select 0, %s16, %s14
  // Predicated region
  $region2: #{model3_forward.1} parent=0 // pred_check
    _
  $region3: #{model3_forward.1} parent=0 // pred_check_branch
    %19 = sbr.rel (0) target = $region5
  $region4: #{model3_forward.1} parent=0 // pred_region
    _
  $region5: #{model3_forward.1} parent=0 // pred_fallthru
    _
  // Predicated region
  $region6: #{model3_forward.1} parent=0 // pred_check
    _
  $region7: #{model3_forward.1} parent=0 // pred_check_branch
    %21 = sbr.rel (0) target = $region9
  $region8: #{model3_forward.1} parent=0 // pred_region
    _
  $region9: #{model3_forward.1} parent=0 // pred_fallthru
    _
  // Predicated region
  $region10: #{model3_forward.1} parent=0 // pred_check
    _
  $region11: #{model3_forward.1} parent=0 // pred_check_branch
    %23 = sbr.rel (0) target = $region13
  $region12: #{model3_forward.1} parent=0 // pred_region
    _
  $region13: #{model3_forward.1} parent=0 // pred_fallthru
    _
  // Predicated region
  $region14: #{model3_forward.1} parent=0 // pred_check
    _
  $region15: #{model3_forward.1} parent=0 // pred_check_branch
    %25 = sbr.rel (0) target = $region17
  $region16: #{model3_forward.1} parent=0 // pred_region
    _
  $region17: #{model3_forward.1} parent=0 // pred_fallthru
    _
  // Predicated region
  $region18: #{model3_forward.1} parent=0 // pred_check
    _
  $region19: #{model3_forward.1} parent=0 // pred_check_branch
    %27 = sbr.rel (0) target = $region21
  $region20: #{model3_forward.1} parent=0 // pred_region
    _
  $region21: #{model3_forward.1} parent=0 // pred_fallthru
    _
  // Predicated region
  $region22: #{model3_forward.1} parent=0 // pred_check
    _
  $region23: #{model3_forward.1} parent=0 // pred_check_branch
    %29 = sbr.rel (0) target = $region25
  $region24: #{model3_forward.1} parent=0 // pred_region
    _
  $region25: #{model3_forward.1} parent=0 // pred_fallthru
    _
  // Predicated region
  $region26: #{model3_forward.1} parent=0 // pred_check
    _
  $region27: #{model3_forward.1} parent=0 // pred_check_branch
    %31 = sbr.rel (0) target = $region29
  $region28: #{model3_forward.1} parent=0 // pred_region
    _
  $region29: #{model3_forward.1} parent=0 // pred_fallthru
    _
  // Predicated region
  $region30: #{model3_forward.1} parent=0 // pred_check
    _
  $region31: #{model3_forward.1} parent=0 // pred_check_branch
    %33 = sbr.rel (0) target = $region33
  $region32: #{model3_forward.1} parent=0 // pred_region
    _
  $region33: #{model3_forward.1} parent=0 // pred_fallthru
    _
  // Predicated region
  $region34: #{model3_forward.1} parent=0 // pred_check
    _
  $region35: #{model3_forward.1} parent=0 // pred_check_branch
    %35 = sbr.rel (0) target = $region37
  $region36: #{model3_forward.1} parent=0 // pred_region
    _
  $region37: #{model3_forward.1} parent=0 // pred_fallthru
    _
  // Predicated region
  $region38: #{model3_forward.1} parent=0 // pred_check
    _
  $region39: #{model3_forward.1} parent=0 // pred_check_branch
    %37 = sbr.rel (0) target = $region41
  $region40: #{model3_forward.1} parent=0 // pred_region
    _
  $region41: #{model3_forward.1} parent=0 // pred_fallthru
    _
  // Predicated region
  $region42: #{model3_forward.1} parent=0 // pred_check
    _
  $region43: #{model3_forward.1} parent=0 // pred_check_branch
    %39 = sbr.rel (0) target = $region45
  $region44: #{model3_forward.1} parent=0 // pred_region
    _
  $region45: #{model3_forward.1} parent=0 // pred_fallthru
    _
  // Predicated region
  $region46: #{model3_forward.1} parent=0 // pred_check
    _
  $region47: #{model3_forward.1} parent=0 // pred_check_branch
    %41 = sbr.rel (0) target = $region49
  $region48: #{model3_forward.1} parent=0 // pred_region
    _
  $region49: #{model3_forward.1} parent=0 // pred_fallthru
    _
  // Predicated region
  $region50: #{model3_forward.1} parent=0 // pred_check
    _
  $region51: #{model3_forward.1} parent=0 // pred_check_branch
    %43 = sbr.rel (0) target = $region53
  $region52: #{model3_forward.1} parent=0 // pred_region
    _
  $region53: #{model3_forward.1} parent=0 // pred_fallthru
    _
  %v45 = vld [vmem:[%s0] sm:$0xff]
  %v46 = vld [vmem:[%s0 + $0x8] sm:$0xff]
  %v47 = vpack.c.bf16 %v46, %v45
  %v48 = vld [vmem:[%s2] sm:$0xf]
  %v49 = vld [vmem:[%s2 + $0x4] sm:$0xf]
  %v50 = vld [vmem:[%s2 + $0x8] sm:$0xf]
  %v51 = vld [vmem:[%s2 + $0xc] sm:$0xf]
  %v52 = vld [vmem:[%s1] sm:$0xff]
  %v53 = vld [vmem:[%s1 + $0x8] sm:$0xff]
  %v54 = vpack.c.bf16 %v53, %v52
  %v55 = vld [vmem:[%s3] sm:$0xf]
  %v56 = vld [vmem:[%s3 + $0x4] sm:$0xf]
  %v57 = vld [vmem:[%s3 + $0x8] sm:$0xf]
  %v58 = vld [vmem:[%s3 + $0xc] sm:$0xf]
  %v63 = vunpack.c.l.b16 %v55
  %v64 = vunpack.c.l.b16 %v56
  %v65 = vunpack.c.l.b16 %v57
  %v66 = vunpack.c.l.b16 %v58
  %v67 = vpack.c.b16 %v64, %v63
  %v68 = vpack.c.b16 %v66, %v65
  %vm71 = vcmask 261120
  %v73 = vsel %vm71, %v54, 0
  %75 = vmatpush.bf16.msra.mxu0 0
  %76 = vmatpush.bf16.msra.mxu0 0
  %77 = vmatpush.bf16.msra.mxu0 0
  %78 = vmatpush.bf16.msra.mxu0 0
  %79 = vmatpush.bf16.msra.mxu0 0
  %80 = vmatpush.bf16.msra.mxu0 0
  %81 = vmatpush.bf16.msra.mxu0 %v68
  %82 = vmatpush.bf16.msra.mxu0 %v67
  %83 = vmatmul.bf16.gmra.mxu0 %v73
  %v84 = vpop.f32.mrf.mxu0
  %v85 = vadd.f32 0.0, %v84
  %v86 = vpop.f32.mrf.mxu0
  %v87 = vadd.f32 0.0, %v86
  %88 = vdwg.mxu0
  %v93 = vunpack.c.l.b16 %v48
  %v94 = vunpack.c.l.b16 %v49
  %v95 = vunpack.c.l.b16 %v50
  %v96 = vunpack.c.l.b16 %v51
  %v97 = vpack.c.b16 %v94, %v93
  %v98 = vpack.c.b16 %v96, %v95
  %v102 = vsel %vm71, %v47, 0
  %104 = vmatpush.bf16.msra.mxu0 0
  %105 = vmatpush.bf16.msra.mxu0 0
  %106 = vmatpush.bf16.msra.mxu0 0
  %107 = vmatpush.bf16.msra.mxu0 0
  %108 = vmatpush.bf16.msra.mxu0 0
  %109 = vmatpush.bf16.msra.mxu0 0
  %110 = vmatpush.bf16.msra.mxu0 %v98
  %111 = vmatpush.bf16.msra.mxu0 %v97
  %112 = vmatmul.bf16.gmra.mxu0 %v102
  %v113 = vpop.f32.mrf.mxu0
  %v114 = vadd.f32 %v85, %v113
  %v115 = vpop.f32.mrf.mxu0
  %v116 = vadd.f32 %v87, %v115
  %117 = vdwg.mxu0
  %v118 = vld [vmem:[%s4] sm:$0x1]
  %v120 = vperm.slane %v118, 0
  %v122 = vadd.f32 %v114, %v120
  %v123 = vadd.f32 %v116, %v120
  %v124 = vmax.f32 %v122, 0.0
  %v125 = vmax.f32 %v123, 0.0
  %v126 = vpack.c.bf16 %v125, %v124
  %v127 = vld [vmem:[%s5] sm:$0xf]
  %v128 = vld [vmem:[%s5 + $0x4] sm:$0xf]
  %v129 = vld [vmem:[%s5 + $0x8] sm:$0xf]
  %v130 = vld [vmem:[%s5 + $0xc] sm:$0xf]
  %v131 = vld [vmem:[%s6] sm:$0x1]
  %v133 = vperm.slane %v131, 0
  %v139 = vunpack.c.l.b16 %v127
  %v140 = vunpack.c.l.b16 %v128
  %v141 = vunpack.c.l.b16 %v129
  %v142 = vunpack.c.l.b16 %v130
  %v143 = vpack.c.b16 %v140, %v139
  %v144 = vpack.c.b16 %v142, %v141
  %v148 = vsel %vm71, %v126, 0
  %150 = vmatpush.bf16.msra.mxu0 0
  %151 = vmatpush.bf16.msra.mxu0 0
  %152 = vmatpush.bf16.msra.mxu0 0
  %153 = vmatpush.bf16.msra.mxu0 0
  %154 = vmatpush.bf16.msra.mxu0 0
  %155 = vmatpush.bf16.msra.mxu0 0
  %156 = vmatpush.bf16.msra.mxu0 %v144
  %157 = vmatpush.bf16.msra.mxu0 %v143
  %158 = vmatmul.bf16.gmra.mxu0 %v148
  %v159 = vpop.f32.mrf.mxu0
  %v160 = vadd.f32 %v133, %v159
  %v161 = vpop.f32.mrf.mxu0
  %v162 = vadd.f32 %v133, %v161
  %163 = vdwg.mxu0
  %v164 = vmax.f32 %v160, 0.0
  %v165 = vmax.f32 %v162, 0.0
  %v166 = vpack.c.bf16 %v165, %v164
  %v167 = vld [vmem:[%s7] sm:$0xf]
  %v168 = vld [vmem:[%s7 + $0x4] sm:$0xf]
  %v169 = vld [vmem:[%s8] sm:$0x1]
  %v171 = vperm.slane %v169, 0
  %v175 = vunpack.c.l.b16 %v167
  %v176 = vunpack.c.l.b16 %v168
  %v177 = vpack.c.b16 %v176, %v175
  %vm179 = vcmask 130048
  %v181 = vsel %vm179, %v166, 0
  %183 = vmatpush.bf16.msra.mxu0 0
  %184 = vmatpush.bf16.msra.mxu0 0
  %185 = vmatpush.bf16.msra.mxu0 0
  %186 = vmatpush.bf16.msra.mxu0 0
  %187 = vmatpush.bf16.msra.mxu0 0
  %188 = vmatpush.bf16.msra.mxu0 0
  %189 = vmatpush.bf16.msra.mxu0 0
  %190 = vmatpush.bf16.msra.mxu0 %v177
  %191 = vmatmul.bf16.gmra.mxu0 %v181
  %v192 = vpop.f32.mrf.mxu0
  %v193 = vadd.f32 %v171, %v192
  %v194 = vpop.f32.mrf.mxu0
  %v195 = vadd.f32 %v171, %v194
  %196 = vdwg.mxu0
  %v197 = vmax.f32 %v193, 0.0
  %v198 = vmax.f32 %v195, 0.0
  %v199 = vpack.c.bf16 %v198, %v197
  %v200 = vld [vmem:[%s9] sm:$0xf]
  %v201 = vld [vmem:[%s10] sm:$0x1]
  %v203 = vperm.slane %v201, 0
  %vm205 = vcmask 64512
  %v207 = vsel %vm205, %v199, 0
  %vm209 = vcmask 1043456
  %v211 = vsel %vm209, %v200, 0
  %213 = vmatpush.bf16.msra.mxu0 0
  %214 = vmatpush.bf16.msra.mxu0 0
  %215 = vmatpush.bf16.msra.mxu0 0
  %216 = vmatpush.bf16.msra.mxu0 0
  %217 = vmatpush.bf16.msra.mxu0 0
  %218 = vmatpush.bf16.msra.mxu0 0
  %219 = vmatpush.bf16.msra.mxu0 0
  %220 = vmatpush.bf16.msra.mxu0 %v211
  %221 = vmatmul.bf16.gmra.mxu0 %v207
  %v222 = vpop.f32.mrf.mxu0
  %v223 = vadd.f32 %v203, %v222
  %v224 = vpop.f32.mrf.mxu0
  %v225 = vadd.f32 %v203, %v224
  %226 = vdwg.mxu0
  %v227 = vmax.f32 %v223, 0.0
  %v228 = vmax.f32 %v225, 0.0
  %v229 = vld [vmem:[%s11] sm:$0xf]
  %v230 = vpack.c.bf16 %v228, %v227
  %v231 = vld [vmem:[%s12] sm:$0xff]
  %233 = vset.pattern.permute.xlu0 0
  %234 = vperm.xlu0 %233, %v231
  %v235 = vpop.permute.xlu0 %234
  %vm237 = vcmask 31744
  %v239 = vsel %vm237, %v229, 0
  %v242 = vsel %vm237, %v230, 0
  %244 = vmatpush.bf16.xpose.msra.mxu0 0
  %245 = vmatpush.bf16.xpose.msra.mxu0 0
  %246 = vmatpush.bf16.xpose.msra.mxu0 0
  %247 = vmatpush.bf16.xpose.msra.mxu0 0
  %248 = vmatpush.bf16.xpose.msra.mxu0 0
  %249 = vmatpush.bf16.xpose.msra.mxu0 0
  %250 = vmatpush.bf16.xpose.msra.mxu0 0
  %251 = vmatpush.bf16.xpose.msra.mxu0 %v242
  %252 = vmatmul.bf16.gmra.mxu0 %v239
  %v253 = vpop.f32.mrf.mxu0
  %v254 = vadd.f32 %v235, %v253
  %v255 = vpop.f32.mrf.mxu0
  %256 = vdwg.mxu0
  %257 = vst.msk [vmem:[%s13] sm:$0xff] %vm179, %v254
  // Predicated region
  $region54: #{model3_forward.1} parent=0 // pred_check
    _
  $region55: #{model3_forward.1} parent=0 // pred_check_branch
    %259 = sbr.rel (0) target = $region57
  $region56: #{model3_forward.1} parent=0 // pred_region
    _
  $region57: #{model3_forward.1} parent=0 // pred_fallthru
    _
  // Predicated region
  $region58: #{model3_forward.1} parent=0 // pred_check
    _
  $region59: #{model3_forward.1} parent=0 // pred_check_branch
    %261 = sbr.rel (0) target = $region61
  $region60: #{model3_forward.1} parent=0 // pred_region
    _
  $region61: #{model3_forward.1} parent=0 // pred_fallthru
    _

</llo_original>
